<compile_context>
chip_gen: v6e
topology: v6e:2x2x1
jax: 0.10.0
libtpu: 0.0.40
codegen_flags: <defaults>
</compile_context>

<pallas_src>
import functools

import jax
import jax.numpy as jnp
from jax.experimental import pallas as pl
from jax.experimental.pallas import tpu as pltpu


_VMEM_LIMIT = 64 * 1024 * 1024      # scoped VMEM cap passed to every pallas_call
_GN_FUSED_MAX_ROWS = 4096           # folded rows handled as one block per group
_GN_ROW_TILE = 1024                 # row tile for the two-pass (large R) path


# ----------------------------------------------------------------------------
# helpers
# ----------------------------------------------------------------------------
def _apply_act(r, act, slope):
    if act == "relu":
        return jnp.maximum(r, 0.0)
    if act == "lrelu":
        return jnp.where(r >= 0, r, r * slope)
    if act == "tanh":
        return jnp.tanh(r)
    return r


def _round_up(x, m):
    return ((x + m - 1) // m) * m


# ----------------------------------------------------------------------------
# Pallas kernel 1: matmul with fused bias + activation (single full-K block)
# ----------------------------------------------------------------------------
def _matmul_kernel(a_ref, b_ref, bias_ref, o_ref, *, act, slope):
    r = jnp.dot(a_ref[...], b_ref[...], preferred_element_type=jnp.float32)
    r = r + bias_ref[...]
    o_ref[...] = _apply_act(r, act, slope).astype(o_ref.dtype)


def matmul_bias_act(a, b, bias, act="none", slope=0.2, out_dtype=jnp.bfloat16):
    """(M,K) @ (K,N) + bias[N] with fused activation, bf16 in/out, f32 MXU acc.

    Thin outputs (N < 128) are folded lane-dense: A (M,K) is (freely) reshaped
    to (M/g, g*K) and B becomes blockdiag_g(B), so the output block is a full
    128-lane slab and stores are unmasked.
    """
    M0, K0 = a.shape
    _, N0 = b.shape
    a = a.astype(jnp.bfloat16)
    b = b.astype(jnp.bfloat16)
    bias = bias.reshape(-1).astype(jnp.float32)

    M, K, N = M0, K0, N0
    fold = 1
    if N < 128:
        Np = _round_up(N, 8)
        if Np != N:
            b = jnp.pad(b, ((0, 0), (0, Np - N)))
            bias = jnp.pad(bias, (0, Np - N))
        N = Np
        if 128 % N == 0:
            g = 128 // N
            while g > 1 and M % g:
                g //= 2
            if g > 1:
                a = a.reshape(M // g, g * K)
                b = jnp.kron(jnp.eye(g, dtype=b.dtype), b)    # block-diagonal
                bias = jnp.tile(bias, g)
                fold = g
                M, K, N = M // g, g * K, g * N
    elif N % 128 != 0:
        Np = _round_up(N, 128)
        b = jnp.pad(b, ((0, 0), (0, Np - N)))
        bias = jnp.pad(bias, (0, Np - N))
        N = Np
    bias2 = bias.reshape(1, N)

    # ---- M tiling ----
    if M >= 2048 and K <= 2048:
        tm = 1024
    elif M >= 1024:
        tm = 512
    elif M >= 512:
        tm = 256
    elif M >= 128:
        tm = 128
    else:
        tm = _round_up(max(M, 8), 16)
    Mp = _round_up(M, tm)
    if Mp != M:
        a = jnp.pad(a, ((0, Mp - M), (0, 0)))

    # ---- N tiling (256-wide when possible to feed v6e/v7x's 256-wide MXU) ----
    if N % 256 == 0:
        tn = 256
    elif N % 128 == 0:
        tn = 128
    else:
        tn = N                     # full-dim lane block (fold not applicable)

    grid = (Mp // tm, N // tn)
    out = pl.pallas_call(
        functools.partial(_matmul_kernel, act=act, slope=slope),
        out_shape=jax.ShapeDtypeStruct((Mp, N), out_dtype),
        grid_spec=pltpu.PrefetchScalarGridSpec(
            num_scalar_prefetch=0,
            grid=grid,
            in_specs=[
                pl.BlockSpec((tm, K), lambda i, j: (i, 0)),
                pl.BlockSpec((K, tn), lambda i, j: (0, j)),
                pl.BlockSpec((1, tn), lambda i, j: (0, j)),
            ],
            out_specs=pl.BlockSpec((tm, tn), lambda i, j: (i, j)),
        ),
        compiler_params=pltpu.CompilerParams(
            dimension_semantics=("parallel", "parallel"),
            vmem_limit_bytes=_VMEM_LIMIT),
    )(a, b, bias2)

    if Mp != M:
        out = out[:M]
    if fold > 1:
        out = out.reshape(M0, N // fold)
    if out.shape[1] != N0:
        out = out[:, :N0]
    return out


# ----------------------------------------------------------------------------
# Pallas kernel 1b: SFT stage-2 matmul with fused x0*scale+shift combine
# ----------------------------------------------------------------------------
def _sft_matmul_kernel(a_ref, b_ref, bias_ref, x0_ref, o_ref):
    st = jnp.dot(a_ref[...], b_ref[...], preferred_element_type=jnp.float32)
    st = st + bias_ref[...]
    c = o_ref.shape[-1]
    r = x0_ref[...].astype(jnp.float32) * st[:, :c] + st[:, c:]
    o_ref[...] = r.astype(o_ref.dtype)


def sft_stage2_combine(h, x0, w_s2, b_s2, w_h2, b_h2):
    """h: (N,H,W,128) = [scale_branch | shift_branch]; x0: (N,H,W,64).
    Computes x0 * conv_s2(h[:64]) + conv_h2(h[64:]) in one kernel."""
    N, H, W, _ = h.shape
    M = N * H * W
    A = h.reshape(M, 128).astype(jnp.bfloat16)
    X0 = x0.reshape(M, 64).astype(jnp.bfloat16)
    Bm = jnp.zeros((128, 128), jnp.float32)
    Bm = Bm.at[:64, :64].set(w_s2[:, :, 0, 0].T)
    Bm = Bm.at[64:, 64:].set(w_h2[:, :, 0, 0].T)
    Bm = Bm.astype(jnp.bfloat16)
    bias = jnp.concatenate([b_s2, b_h2]).reshape(1, 128).astype(jnp.float32)

    tm = 256 if M >= 512 else (128 if M >= 128 else _round_up(max(M, 8), 16))
    Mp = _round_up(M, tm)
    if Mp != M:
        A = jnp.pad(A, ((0, Mp - M), (0, 0)))
        X0 = jnp.pad(X0, ((0, Mp - M), (0, 0)))

    out = pl.pallas_call(
        _sft_matmul_kernel,
        out_shape=jax.ShapeDtypeStruct((Mp, 64), jnp.bfloat16),
        grid_spec=pltpu.PrefetchScalarGridSpec(
            num_scalar_prefetch=0,
            grid=(Mp // tm,),
            in_specs=[
                pl.BlockSpec((tm, 128), lambda i: (i, 0)),
                pl.BlockSpec((128, 128), lambda i: (0, 0)),
                pl.BlockSpec((1, 128), lambda i: (0, 0)),
                pl.BlockSpec((tm, 64), lambda i: (i, 0)),
            ],
            out_specs=pl.BlockSpec((tm, 64), lambda i: (i, 0)),
        ),
        compiler_params=pltpu.CompilerParams(
            dimension_semantics=("parallel",), vmem_limit_bytes=_VMEM_LIMIT),
    )(A, Bm, bias, X0)
    if Mp != M:
        out = out[:M]
    return out.reshape(N, H, W, 64)


# ----------------------------------------------------------------------------
# Pallas kernel 2: grouped column normalization + affine + activation
# (BatchNorm2d training-mode stats / AdaIN instance norm), optional residual.
# Lane-dense: the (R, C) group slab is viewed as (R/g, g*C), g = 128/C.
# ----------------------------------------------------------------------------
def _fold_combine(v, fold, chan):
    """v: (1, fold*chan).  Sum the `fold` lane replicas of each channel with a
    log2(fold) rotate-and-add butterfly (XLU slot, essentially free)."""
    step = chan
    while step < fold * chan:
        v = v + pltpu.roll(v, shift=step, axis=1)
        step *= 2
    return v


def _gn_fused_kernel(x_ref, sc_ref, sh_ref, o_ref, *, eps, act, slope, fold,
                     chan, rows):
    x = x_ref[0].astype(jnp.float32)                       # (Rf, fold*chan)
    inv_n = 1.0 / rows
    s = _fold_combine(jnp.sum(x, axis=0, keepdims=True), fold, chan)
    mean = s * inv_n
    xc = x - mean
    v = _fold_combine(jnp.sum(xc * xc, axis=0, keepdims=True), fold, chan)
    rstd = jax.lax.rsqrt(v * inv_n + eps)
    r = xc * (rstd * sc_ref[0]) + sh_ref[0]
    o_ref[0] = _apply_act(r, act, slope).astype(o_ref.dtype)


def _gn_fused_res_kernel(x_ref, sc_ref, sh_ref, res_ref, o_ref, *, eps, act,
                         slope, fold, chan, rows):
    x = x_ref[0].astype(jnp.float32)
    inv_n = 1.0 / rows
    s = _fold_combine(jnp.sum(x, axis=0, keepdims=True), fold, chan)
    mean = s * inv_n
    xc = x - mean
    v = _fold_combine(jnp.sum(xc * xc, axis=0, keepdims=True), fold, chan)
    rstd = jax.lax.rsqrt(v * inv_n + eps)
    r = xc * (rstd * sc_ref[0]) + sh_ref[0]
    r = _apply_act(r, act, slope) + res_ref[0].astype(jnp.float32)
    o_ref[0] = r.astype(o_ref.dtype)


def _gn_stats_kernel(x_ref, o_ref):
    x = x_ref[0].astype(jnp.float32)                       # (tr, Cf)
    s = jnp.sum(x, axis=0, keepdims=True)
    ss = jnp.sum(x * x, axis=0, keepdims=True)
    o_ref[0, 0] = jnp.concatenate([s, ss], axis=0)         # (2, Cf)


def _gn_apply_kernel(x_ref, sc_ref, sh_ref, o_ref, *, act, slope):
    r = x_ref[...].astype(jnp.float32) * sc_ref[...] + sh_ref[...]
    o_ref[...] = _apply_act(r, act, slope).astype(o_ref.dtype)


def _gn_apply_res_kernel(x_ref, sc_ref, sh_ref, res_ref, o_ref, *, act, slope):
    r = x_ref[...].astype(jnp.float32) * sc_ref[...] + sh_ref[...]
    r = _apply_act(r, act, slope) + res_ref[...].astype(jnp.float32)
    o_ref[...] = r.astype(o_ref.dtype)


def group_norm_affine(x_g, scale_g, shift_g, eps=1e-5, act="none", slope=0.2,
                      residual=None, out_dtype=jnp.bfloat16):
    """x_g: (G, R, C).  Per-group per-channel stats over R, then scale/shift,
    activation and optional fused residual add."""
    G, R, C = x_g.shape
    scale_g = scale_g.reshape(G, C).astype(jnp.float32)
    shift_g = shift_g.reshape(G, C).astype(jnp.float32)

    fold = 1
    if C < 128 and 128 % C == 0:
        fold = 128 // C
        while fold > 1 and R % fold:
            fold //= 2
    Rf, Cf = R // fold, C * fold
    xf = x_g.reshape(G, Rf, Cf)
    resf = residual.reshape(G, Rf, Cf) if residual is not None else None

    if Rf <= _GN_FUSED_MAX_ROWS:
        # ---- single-block fused stats + affine (+ residual) per group ----
        sc_f = jnp.tile(scale_g, (1, fold)).reshape(G, 1, Cf)
        sh_f = jnp.tile(shift_g, (1, fold)).reshape(G, 1, Cf)
        in_specs = [pl.BlockSpec((1, Rf, Cf), lambda i: (i, 0, 0)),
                    pl.BlockSpec((1, 1, Cf), lambda i: (i, 0, 0)),
                    pl.BlockSpec((1, 1, Cf), lambda i: (i, 0, 0))]
        args = [xf, sc_f, sh_f]
        if resf is not None:
            in_specs.append(pl.BlockSpec((1, Rf, Cf), lambda i: (i, 0, 0)))
            args.append(resf)
            kern = functools.partial(_gn_fused_res_kernel, eps=eps, act=act,
                                     slope=slope, fold=fold, chan=C, rows=R)
        else:
            kern = functools.partial(_gn_fused_kernel, eps=eps, act=act,
                                     slope=slope, fold=fold, chan=C, rows=R)
        out = pl.pallas_call(
            kern,
            out_shape=jax.ShapeDtypeStruct((G, Rf, Cf), out_dtype),
            grid_spec=pltpu.PrefetchScalarGridSpec(
                num_scalar_prefetch=0, grid=(G,),
                in_specs=in_specs,
                out_specs=pl.BlockSpec((1, Rf, Cf), lambda i: (i, 0, 0))),
            compiler_params=pltpu.CompilerParams(
                dimension_semantics=("parallel",),
                vmem_limit_bytes=_VMEM_LIMIT),
        )(*args)
        return out.reshape(G, R, C)

    # ---- two-pass, row-tiled path (large R / real resolutions) ----
    # TODO(synk): the stats here could be fused into the preceding matmul's
    # epilogue to remove one extra HBM read of the conv output.
    tr = _GN_ROW_TILE
    Rp = _round_up(Rf, tr)
    if Rp != Rf:
        xf = jnp.pad(xf, ((0, 0), (0, Rp - Rf), (0, 0)))
        if resf is not None:
            resf = jnp.pad(resf, ((0, 0), (0, Rp - Rf), (0, 0)))
    nrt = Rp // tr
    cp2 = pltpu.CompilerParams(dimension_semantics=("parallel", "parallel"),
                               vmem_limit_bytes=_VMEM_LIMIT)

    sums = pl.pallas_call(
        _gn_stats_kernel,
        out_shape=jax.ShapeDtypeStruct((G, nrt, 2, Cf), jnp.float32),
        grid_spec=pltpu.PrefetchScalarGridSpec(
            num_scalar_prefetch=0, grid=(G, nrt),
            in_specs=[pl.BlockSpec((1, tr, Cf), lambda i, j: (i, j, 0))],
            out_specs=pl.BlockSpec((1, 1, 2, Cf), lambda i, j: (i, j, 0, 0))),
        compiler_params=cp2,
    )(xf)
    # tiny per-channel combine in XLA: (G, nrt, 2, Cf) -> (G, 2, C)
    tot = sums.sum(axis=1).reshape(G, 2, fold, C).sum(axis=2)
    mean = tot[:, 0] / R
    var = jnp.maximum(tot[:, 1] / R - mean * mean, 0.0)
    rstd = jax.lax.rsqrt(var + eps)
    eff_sc = scale_g * rstd
    eff_sh = shift_g - mean * eff_sc
    eff_sc_f = jnp.tile(eff_sc, (1, fold)).reshape(G, 1, Cf)
    eff_sh_f = jnp.tile(eff_sh, (1, fold)).reshape(G, 1, Cf)

    in_specs = [pl.BlockSpec((1, tr, Cf), lambda i, j: (i, j, 0)),
                pl.BlockSpec((1, 1, Cf), lambda i, j: (i, 0, 0)),
                pl.BlockSpec((1, 1, Cf), lambda i, j: (i, 0, 0))]
    args = [xf, eff_sc_f, eff_sh_f]
    if resf is not None:
        in_specs.append(pl.BlockSpec((1, tr, Cf), lambda i, j: (i, j, 0)))
        args.append(resf)
        kern = functools.partial(_gn_apply_res_kernel, act=act, slope=slope)
    else:
        kern = functools.partial(_gn_apply_kernel, act=act, slope=slope)
    out = pl.pallas_call(
        kern,
        out_shape=jax.ShapeDtypeStruct((G, Rp, Cf), out_dtype),
        grid_spec=pltpu.PrefetchScalarGridSpec(
            num_scalar_prefetch=0, grid=(G, nrt),
            in_specs=in_specs,
            out_specs=pl.BlockSpec((1, tr, Cf), lambda i, j: (i, j, 0))),
        compiler_params=cp2,
    )(*args)
    return out[:, :Rf].reshape(G, R, C)


# ----------------------------------------------------------------------------
# Conv wrappers (NHWC glue: padding, patch gather, reshapes)
# ----------------------------------------------------------------------------
def conv2d(x, w, b, stride=1, pad=0, pad_mode="zero", act="none", slope=0.2):
    """x: (N,H,W,C) NHWC bf16; w: (OC,IC,KH,KW) PyTorch layout.  Returns NHWC bf16."""
    N, H, W, C = x.shape
    OC, IC, KH, KW = w.shape
    if pad > 0:
        mode = "reflect" if pad_mode == "reflect" else "constant"
        x = jnp.pad(x, ((0, 0), (pad, pad), (pad, pad), (0, 0)), mode=mode)
        H, W = H + 2 * pad, W + 2 * pad
    OH = (H - KH) // stride + 1
    OW = (W - KW) // stride + 1
    if KH == 1 and KW == 1 and stride == 1:
        A = x.reshape(N * OH * OW, C)                 # 1x1 fast path: no im2col
    else:
        # TODO(synk): im2col is still materialized in HBM; an implicit-GEMM
        # kernel with a (kh,kw) grid axis + shifted index_maps (stride-1 convs)
        # would cut activation traffic ~KH*KW x further.
        cols = [x[:, i:i + stride * (OH - 1) + 1:stride,
                  j:j + stride * (OW - 1) + 1:stride, :]
                for i in range(KH) for j in range(KW)]
        A = jnp.stack(cols, axis=3).reshape(N * OH * OW, KH * KW * C)
    B = w.transpose(2, 3, 1, 0).reshape(KH * KW * IC, OC)
    out = matmul_bias_act(A, B, b, act=act, slope=slope)
    return out.reshape(N, OH, OW, OC)


def conv_transpose2d(x, w, b):
    """PyTorch ConvTranspose2d(k=3, stride=2, padding=1, output_padding=1),
    NHWC input, via sub-pixel (phase) decomposition: one matmul on the
    un-dilated input + depth-to-space."""
    N, H, W, IC = x.shape
    IC2, OC, KH, KW = w.shape
    assert (IC2, KH, KW) == (IC, 3, 3)
    xp = jnp.pad(x, ((0, 0), (0, 1), (0, 1), (0, 0)))   # zero row/col at far edge
    t00 = xp[:, :H, :W, :]
    t01 = xp[:, :H, 1:, :]
    t10 = xp[:, 1:, :W, :]
    t11 = xp[:, 1:, 1:, :]
    A = jnp.concatenate([t00, t01, t10, t11], axis=-1).reshape(N * H * W, 4 * IC)

    z = jnp.zeros((IC, OC), w.dtype)
    wk = lambda kh, kw: w[:, :, kh, kw]                 # (IC, OC)
    # rows = taps [t00,t01,t10,t11]; cols = output phases [ee,eo,oe,oo]
    Wmat = jnp.block([
        [wk(1, 1), wk(1, 2), wk(2, 1), wk(2, 2)],
        [z,        wk(1, 0), z,        wk(2, 0)],
        [z,        z,        wk(0, 1), wk(0, 2)],
        [z,        z,        z,        wk(0, 0)],
    ])                                                  # (4*IC, 4*OC)
    bias4 = jnp.concatenate([b, b, b, b])
    out = matmul_bias_act(A, Wmat, bias4, act="none")   # (N*H*W, 4*OC) bf16
    # TODO(synk): the zero blocks (37.5% of Wmat) and this depth-to-space
    # transpose could be removed with per-phase matmuls + a strided out_spec.
    out = out.reshape(N, H, W, 2, 2, OC)
    out = out.transpose(0, 1, 3, 2, 4, 5).reshape(N, 2 * H, 2 * W, OC)
    return out


def batchnorm2d(x, weight, bias, act="none"):
    """nn.BatchNorm2d, training-mode batch stats, NHWC input."""
    N, H, W, C = x.shape
    out = group_norm_affine(x.reshape(1, N * H * W, C), weight.reshape(1, C),
                            bias.reshape(1, C), eps=1e-5, act=act)
    return out.reshape(N, H, W, C)


def adain_norm(x, std_bc, mean_bc, act="none", residual=None):
    """AdaptiveInstanceNorm2d: per-(b,c) stats over (H,W); weight=std, bias=mean.
    Optional fused residual add (res blocks)."""
    N, H, W, C = x.shape
    res = residual.reshape(N, H * W, C) if residual is not None else None
    out = group_norm_affine(x.reshape(N, H * W, C), std_bc, mean_bc, eps=1e-5,
                            act=act, residual=res)
    return out.reshape(N, H, W, C)


# ----------------------------------------------------------------------------
# Parameter init (deterministic, synthetic)
# ----------------------------------------------------------------------------
def init_params(key, input_nc, output_nc, L, S, ngf, n_down, n_blocks):
    keys = iter(jax.random.split(key, 256))

    def conv_p(oc, ic, kh, kw):
        w = jax.random.normal(next(keys), (oc, ic, kh, kw), jnp.float32) * 0.05
        b = jax.random.normal(next(keys), (oc,), jnp.float32) * 0.05
        return (w, b)

    p = {}
    # --- LabelEncoder(5, L, 16, 64, norm='none', activ='relu', pad='reflect')
    p["le"] = [conv_p(16, L, 7, 7), conv_p(32, 16, 4, 4), conv_p(64, 32, 4, 4)]
    p["le_last"] = [conv_p(64, 64, 4, 4) for _ in range(3)]  # relu, relu, none
    # --- StyleEncoder(5, S, 16, style_dim, norm='none', activ='relu')
    dim = ngf * 2 ** n_down
    style_dim = n_blocks * 2 * 2 * dim                       # get_num_adain_params
    p["se"] = [conv_p(16, S, 7, 7), conv_p(32, 16, 4, 4), conv_p(64, 32, 4, 4)]
    p["sft1"] = {k: conv_p(64, 64, 1, 1) for k in ("sc1", "sc2", "sh1", "sh2")}
    p["se_mid"] = [conv_p(64, 64, 4, 4) for _ in range(3)]
    p["sft2"] = {k: conv_p(64, 64, 1, 1) for k in ("sc1", "sc2", "sh1", "sh2")}
    p["se_last"] = conv_p(style_dim, 64, 1, 1)
    # --- main model
    p["g0"] = conv_p(ngf, input_nc, 7, 7)
    p["bn0"] = (jnp.ones((ngf,), jnp.float32), jnp.zeros((ngf,), jnp.float32))
    p["down"] = []
    for i in range(n_down):
        mult = 2 ** i
        p["down"].append((conv_p(ngf * mult * 2, ngf * mult, 3, 3),
                          (jnp.ones((ngf * mult * 2,), jnp.float32),
                           jnp.zeros((ngf * mult * 2,), jnp.float32))))
    p["res"] = [(conv_p(dim, dim, 3, 3), conv_p(dim, dim, 3, 3))
                for _ in range(n_blocks)]
    p["up"] = []
    for i in range(n_down):
        m = 2 ** (n_down - i)
        cin, cout = ngf * m, ngf * m // 2
        w = jax.random.normal(next(keys), (cin, cout, 3, 3), jnp.float32) * 0.05
        b = jax.random.normal(next(keys), (cout,), jnp.float32) * 0.05
        p["up"].append(((w, b), (jnp.ones((cout,), jnp.float32),
                                 jnp.zeros((cout,), jnp.float32))))
    p["final"] = conv_p(output_nc, ngf, 7, 7)
    return p, style_dim, dim


# ----------------------------------------------------------------------------
# Forward pass (GlobalGenerator.forward)
# ----------------------------------------------------------------------------
def sft_layer(pf, x0, x1):
    (w_s1, b_s1), (w_s2, b_s2) = pf["sc1"], pf["sc2"]
    (w_h1, b_h1), (w_h2, b_h2) = pf["sh1"], pf["sh2"]
    # stage 1: sc1/sh1 share the input -> one fused 128-wide matmul + lrelu(0.1)
    w1 = jnp.concatenate([w_s1, w_h1], axis=0)
    b1 = jnp.concatenate([b_s1, b_h1], axis=0)
    h = conv2d(x1, w1, b1, act="lrelu", slope=0.1)            # (N,H,W,128)
    # stage 2 + SFT combine (x0*scale + shift) fused into one kernel epilogue
    return sft_stage2_combine(h, x0, w_s2, b_s2, w_h2, b_h2)


def global_generator_forward(p, cfg, x, input_ref, image_ref):
    ngf, n_down, n_blocks = cfg["ngf"], cfg["n_down"], cfg["n_blocks"]
    dim = ngf * 2 ** n_down

    # NCHW (PyTorch interface) -> NHWC bf16 internal layout, once.
    x = x.transpose(0, 2, 3, 1).astype(jnp.bfloat16)
    input_ref = input_ref.transpose(0, 2, 3, 1).astype(jnp.bfloat16)
    image_ref = image_ref.transpose(0, 2, 3, 1).astype(jnp.bfloat16)

    # ---- enc_label: fea1, fea2 ----
    h = conv2d(input_ref, *p["le"][0], stride=1, pad=3, pad_mode="reflect", act="relu")
    h = conv2d(h, *p["le"][1], stride=2, pad=1, pad_mode="reflect", act="relu")
    fea1 = conv2d(h, *p["le"][2], stride=2, pad=1, pad_mode="reflect", act="none")
    h = jnp.maximum(fea1, 0)                                  # nn.ReLU() in model_last
    h = conv2d(h, *p["le_last"][0], stride=2, pad=1, pad_mode="reflect", act="relu")
    h = conv2d(h, *p["le_last"][1], stride=2, pad=1, pad_mode="reflect", act="relu")
    fea2 = conv2d(h, *p["le_last"][2], stride=2, pad=1, pad_mode="reflect", act="none")

    # ---- enc_style: adain_params ----
    h = conv2d(image_ref, *p["se"][0], stride=1, pad=3, pad_mode="reflect", act="relu")
    h = conv2d(h, *p["se"][1], stride=2, pad=1, pad_mode="reflect", act="relu")
    h = conv2d(h, *p["se"][2], stride=2, pad=1, pad_mode="reflect", act="relu")
    h = sft_layer(p["sft1"], h, fea1)
    for cw in p["se_mid"]:
        h = conv2d(h, *cw, stride=2, pad=1, pad_mode="reflect", act="relu")
    h = sft_layer(p["sft2"], h, fea2)
    # AdaptiveAvgPool2d(1): trivial spatial mean (f32 accumulate), plain JAX.
    h = jnp.mean(h.astype(jnp.float32), axis=(1, 2), keepdims=True).astype(jnp.bfloat16)
    adain_params = conv2d(h, *p["se_last"], act="none")        # (B,1,1,style_dim)
    adain_params = adain_params.reshape(adain_params.shape[0], -1)

    # ---- main model ----
    h = conv2d(x, *p["g0"], stride=1, pad=3, pad_mode="reflect", act="none")
    h = batchnorm2d(h, *p["bn0"], act="relu")
    for (cw, bn) in p["down"]:
        h = conv2d(h, *cw, stride=2, pad=1, pad_mode="zero", act="none")
        h = batchnorm2d(h, *bn, act="relu")
    off = 0
    for (c1, c2) in p["res"]:
        r = conv2d(h, *c1, stride=1, pad=1, pad_mode="reflect", act="none")
        mean = adain_params[:, off:off + dim]
        std = adain_params[:, off + dim:off + 2 * dim]
        off += 2 * dim
        r = adain_norm(r, std, mean, act="relu")
        r = conv2d(r, *c2, stride=1, pad=1, pad_mode="reflect", act="none")
        mean = adain_params[:, off:off + dim]
        std = adain_params[:, off + dim:off + 2 * dim]
        off += 2 * dim
        h = adain_norm(r, std, mean, act="none", residual=h)   # fused residual add
    for (cw, bn) in p["up"]:
        h = conv_transpose2d(h, *cw)
        h = batchnorm2d(h, *bn, act="relu")
    # NOTE: the reference GlobalGenerator has NO final Tanh (model ends with the
    # 7x7 conv), so act="none" here matches the PyTorch spec.
    h = conv2d(h, *p["final"], stride=1, pad=3, pad_mode="reflect", act="none")
    return h.astype(jnp.float32).transpose(0, 3, 1, 2)         # back to NCHW f32


# ----------------------------------------------------------------------------
if __name__ == "__main__":
    # --- quick numerical self-checks of the two Pallas building blocks ---
    k1, k2, k3, k4 = jax.random.split(jax.random.PRNGKey(1), 4)
    # matmul (exercises the thin-N lane-fold path)
    At = jax.random.normal(k1, (64, 40), jnp.float32).astype(jnp.bfloat16)
    Bt = jax.random.normal(k2, (40, 16), jnp.float32).astype(jnp.bfloat16)
    bt = jax.random.normal(k3, (16,), jnp.float32)
    got = matmul_bias_act(At, Bt, bt, act="relu").astype(jnp.float32)
    ref = jnp.maximum(At.astype(jnp.float32) @ Bt.astype(jnp.float32) + bt, 0.0)
    assert jnp.allclose(got, ref, atol=0.1, rtol=0.05), "matmul self-check failed"
    # group norm (exercises the row-tiled two-pass path used at real sizes)
    Xt = jax.random.normal(k4, (2, 8 * _GN_FUSED_MAX_ROWS, 32),
                           jnp.float32).astype(jnp.bfloat16)
    sc = jnp.full((2, 32), 1.5, jnp.float32)
    sh = jnp.full((2, 32), 0.25, jnp.float32)
    gotn = group_norm_affine(Xt, sc, sh, act="relu").astype(jnp.float32)
    xf32 = Xt.astype(jnp.float32)
    m = xf32.mean(axis=1, keepdims=True)
    v = ((xf32 - m) ** 2).mean(axis=1, keepdims=True)
    refn = jnp.maximum((xf32 - m) * jax.lax.rsqrt(v + 1e-5) * sc[:, None, :]
                       + sh[:, None, :], 0.0)
    assert jnp.allclose(gotn, refn, atol=0.05, rtol=0.05), "groupnorm self-check failed"

    # --- GlobalGenerator demo config: input_nc=4, output_nc=3, L=4, S=3,
    #     ngf=8, n_downsampling=2, n_blocks=2 (SFT convs hardcode 64 channels).
    input_nc, output_nc, L, S = 4, 3, 4, 3
    ngf, n_down, n_blocks = 8, 2, 2

    key = jax.random.PRNGKey(0)
    kp, kx, kr, ki = jax.random.split(key, 4)
    params, style_dim, dim = init_params(kp, input_nc, output_nc, L, S,
                                         ngf, n_down, n_blocks)

    x = jax.random.normal(kx, (2, input_nc, 16, 16), jnp.float32)
    input_ref = jax.random.normal(kr, (2, L, 32, 32), jnp.float32)
    image_ref = jax.random.normal(ki, (2, S, 32, 32), jnp.float32)

    cfg = {"ngf": ngf, "n_down": n_down, "n_blocks": n_blocks}
    fwd = jax.jit(lambda a, b, c: global_generator_forward(params, cfg, a, b, c))

    out = fwd(x, input_ref, image_ref)
    jax.block_until_ready(out)
    assert out.shape == (2, output_nc, 16, 16), out.shape
    assert bool(jnp.all(jnp.isfinite(out)))
    print("KERNEL_OK")
</pallas_src>

<mosaic_0001>
module attributes {stable_mosaic.version = 11 : i64} {
  func.func @_matmul_kernel(%arg0: i32, %arg1: i32, %arg2: memref<16x320xbf16, #tpu.memory_space<vmem>>, %arg3: memref<320x128xbf16, #tpu.memory_space<vmem>>, %arg4: memref<1x128xf32, #tpu.memory_space<vmem>>, %arg5: memref<16x128xbf16, #tpu.memory_space<vmem>>) attributes {dimension_semantics = [#tpu.dimension_semantics<parallel>, #tpu.dimension_semantics<parallel>], iteration_bounds = array<i64: 1, 1>, scalar_prefetch = 0 : i64, scratch_operands = 0 : i64, tpu.core_type = #tpu.core_type<tc>, window_params = [{transform_indices = @transform_0, window_bounds = array<i64: 16, 320>}, {transform_indices = @transform_1, window_bounds = array<i64: 320, 128>}, {transform_indices = @transform_2, window_bounds = array<i64: 1, 128>}, {transform_indices = @transform_3, window_bounds = array<i64: 16, 128>}]} {
    %c0 = arith.constant 0 : index
    %c0_0 = arith.constant 0 : index
    %0 = vector.load %arg2[%c0, %c0_0] : memref<16x320xbf16, #tpu.memory_space<vmem>>, vector<16x320xbf16>
    %c0_1 = arith.constant 0 : index
    %c0_2 = arith.constant 0 : index
    %1 = vector.load %arg3[%c0_1, %c0_2] : memref<320x128xbf16, #tpu.memory_space<vmem>>, vector<320x128xbf16>
    %cst = arith.constant dense<0.000000e+00> : vector<16x128xf32>
    %2 = tpu.matmul %0, %1, %cst {dimension_numbers = #tpu.dot_dimension_numbers<[1], [0], [0], [1], [0, 0, 1, 1], [], []>} : vector<16x320xbf16>, vector<320x128xbf16>, vector<16x128xf32> -> vector<16x128xf32>
    %c0_3 = arith.constant 0 : index
    %c0_4 = arith.constant 0 : index
    %3 = vector.load %arg4[%c0_3, %c0_4] : memref<1x128xf32, #tpu.memory_space<vmem>>, vector<1x128xf32>
    %4 = vector.broadcast %3 : vector<1x128xf32> to vector<16x128xf32>
    %5 = arith.addf %2, %4 : vector<16x128xf32>
    %cst_5 = arith.constant 0.000000e+00 : f32
    %6 = vector.broadcast %cst_5 : f32 to vector<16x128xf32>
    %7 = arith.maximumf %5, %6 : vector<16x128xf32>
    %8 = arith.truncf %7 : vector<16x128xf32> to vector<16x128xbf16>
    %c0_6 = arith.constant 0 : index
    %c0_7 = arith.constant 0 : index
    %9 = vector.load %arg5[%c0_6, %c0_7] : memref<16x128xbf16, #tpu.memory_space<vmem>>, vector<16x128xbf16>
    tpu.vector_store %arg5[%c0_6, %c0_7], %8 {strides = array<i32>} : memref<16x128xbf16, #tpu.memory_space<vmem>>, vector<16x128xbf16>,
    return
  }
  func.func @transform_0(%arg0: i32, %arg1: i32) -> (i32, i32) {
    %c0_i32 = arith.constant 0 : i32
    %c0_i32_0 = arith.constant 0 : i32
    return %arg0, %c0_i32 : i32, i32
  }
  func.func @transform_1(%arg0: i32, %arg1: i32) -> (i32, i32) {
    %c0_i32 = arith.constant 0 : i32
    %c0_i32_0 = arith.constant 0 : i32
    return %c0_i32, %arg1 : i32, i32
  }
  func.func @transform_2(%arg0: i32, %arg1: i32) -> (i32, i32) {
    %c0_i32 = arith.constant 0 : i32
    %c0_i32_0 = arith.constant 0 : i32
    return %c0_i32, %arg1 : i32, i32
  }
  func.func @transform_3(%arg0: i32, %arg1: i32) -> (i32, i32) {
    %c0_i32 = arith.constant 0 : i32
    return %arg0, %arg1 : i32, i32
  }
}

</mosaic_0001>

<llo_original>
// kernel: tpu_custom_call.1
$region0: #{tpu_custom_call.1}
  #allocation0 [shape = 'u32[]', space=smem, size = 0x4, offset = 0x4, fixed_abs, tag = 'smem constant byte address 0x4 - core index']
  #allocation1 [shape = 'u32[144,128]{1,0:T(1,128)}', space=vmem, size = 0x12000, scoped, tag = 'internal scratch']
  %s0 = inlined_call_operand.hbm [shape: bf16[16,320], index: 0, kind: input, shape index: {}]
  %s1 = inlined_call_operand.hbm [shape: bf16[320,128], index: 1, kind: input, shape index: {}]
  %s2 = inlined_call_operand.vmem [shape: f32[1,128], index: 2, kind: input, shape index: {}]
  %s3 = inlined_call_operand.hbm [shape: bf16[16,128], index: 3, kind: output, shape index: {}]
  %s4 = sld [smem:[#allocation0]]
  $region30: #{tpu_custom_call.1} parent=0
    _
  %s6 = ssub.s32 1, %s4
  %s7 = scalar_select 0, %s6, %s4
  $region1: #{tpu_custom_call.1} parent=0
    #allocation2 [shape = 'u8[12288]{0}', space=vmem, size = 0x3000, scoped, tag = 'input window, operand 0, single buffered']
    #allocation3 [shape = 's32[1]{0}', space=sflag, size = 0x4, scoped, tag = 'scoped memory for tpu_custom_call.1']
    #allocation4 [shape = 's32[1]{0}', space=sflag, size = 0x4, scoped, tag = 'scoped memory for tpu_custom_call.1']
    #allocation5 [shape = 'u8[81920]{0}', space=vmem, size = 0x14000, scoped, tag = 'input window, operand 1, single buffered']
    #allocation6 [shape = 's32[1]{0}', space=sflag, size = 0x4, scoped, tag = 'scoped memory for tpu_custom_call.1']
    #allocation7 [shape = 'u8[4096]{0}', space=vmem, size = 0x1000, scoped, tag = 'output window, operand 0, single buffered']
    %8 = vsyncpa [#allocation3], 0
    %9 = vsyncpa [#allocation6], 0
    %10 = vsyncpa [#allocation4], 0
    // Predicated region
    $region2: #{tpu_custom_call.1} parent=1 // pred_check
      _
    $region3: #{tpu_custom_call.1} parent=1 // pred_check_branch
      %12 = sbr.rel (0) target = $region5
    $region4: #{tpu_custom_call.1} parent=1 // pred_region
      %s14 = ssub.s32 384, 384
      %15 = vsyncadd [#allocation3], %s14
      %s16 = sshll.u32 [#allocation2], 4
      %s17 = int_to_ptr.vmem [resolvable:$true] %s16
      %22 = dma.hbm_to_vmem [thread:$0]  %s0, 384, %s17, [#allocation3], 192, 192, 12
    $region5: #{tpu_custom_call.1} parent=1 // pred_fallthru
      _
    // Predicated region
    $region6: #{tpu_custom_call.1} parent=1 // pred_check
      _
    $region7: #{tpu_custom_call.1} parent=1 // pred_check_branch
      %24 = sbr.rel (0) target = $region9
    $region8: #{tpu_custom_call.1} parent=1 // pred_region
      %s26 = ssub.s32 2560, 2560
      %27 = vsyncadd [#allocation6], %s26
      %s28 = sshll.u32 [#allocation5], 4
      %s29 = int_to_ptr.vmem [resolvable:$true] %s28
      %34 = dma.hbm_to_vmem [thread:$0]  %s1, 2560, %s29, [#allocation6], 64, 64, 4
    $region9: #{tpu_custom_call.1} parent=1 // pred_fallthru
      _
    // Predicated region
    $region10: #{tpu_custom_call.1} parent=1 // pred_check
      _
    $region11: #{tpu_custom_call.1} parent=1 // pred_check_branch
      %36 = sbr.rel (0) target = $region13
    $region12: #{tpu_custom_call.1} parent=1 // pred_region
      _
    $region13: #{tpu_custom_call.1} parent=1 // pred_fallthru
      _
    // Predicated region
    $region14: #{tpu_custom_call.1} parent=1 // pred_check
      _
    $region15: #{tpu_custom_call.1} parent=1 // pred_check_branch
      %38 = sbr.rel (0) target = $region17
    $region16: #{tpu_custom_call.1} parent=1 // pred_region
      %39 = dma.done [#allocation3], 384
    $region17: #{tpu_custom_call.1} parent=1 // pred_fallthru
      _
    // Predicated region
    $region18: #{tpu_custom_call.1} parent=1 // pred_check
      _
    $region19: #{tpu_custom_call.1} parent=1 // pred_check_branch
      %41 = sbr.rel (0) target = $region21
    $region20: #{tpu_custom_call.1} parent=1 // pred_region
      %42 = dma.done [#allocation6], 2560
    $region21: #{tpu_custom_call.1} parent=1 // pred_fallthru
      _
    %v44 = vld [vmem:[#allocation2] sm:$0xff]
    %v45 = vld [vmem:[#allocation2 + $0x8] sm:$0xf]
    %v46 = vld [vmem:[#allocation2 + $0xc] sm:$0xff]
    %v47 = vld [vmem:[#allocation2 + $0x14] sm:$0xf]
    %v48 = vld [vmem:[#allocation5] sm:$0xf]
    %v49 = vld [vmem:[#allocation5 + $0x4] sm:$0xf]
    %v50 = vld [vmem:[#allocation5 + $0x8] sm:$0xf]
    %v51 = vld [vmem:[#allocation5 + $0xc] sm:$0xf]
    %v52 = vld [vmem:[#allocation5 + $0x10] sm:$0xf]
    %v53 = vld [vmem:[#allocation5 + $0x14] sm:$0xf]
    %v54 = vld [vmem:[#allocation5 + $0x18] sm:$0xf]
    %v55 = vld [vmem:[#allocation5 + $0x1c] sm:$0xf]
    %v56 = vld [vmem:[#allocation5 + $0x20] sm:$0xf]
    %v57 = vld [vmem:[#allocation5 + $0x24] sm:$0xf]
    %v58 = vld [vmem:[#allocation5 + $0x28] sm:$0xf]
    %v59 = vld [vmem:[#allocation5 + $0x2c] sm:$0xf]
    %v60 = vld [vmem:[#allocation5 + $0x30] sm:$0xf]
    %v61 = vld [vmem:[#allocation5 + $0x34] sm:$0xf]
    %v62 = vld [vmem:[#allocation5 + $0x38] sm:$0xf]
    %v63 = vld [vmem:[#allocation5 + $0x3c] sm:$0xf]
    %v64 = vld [vmem:[#allocation5 + $0x40] sm:$0xf]
    %v65 = vld [vmem:[#allocation5 + $0x44] sm:$0xf]
    %v66 = vld [vmem:[#allocation5 + $0x48] sm:$0xf]
    %v67 = vld [vmem:[#allocation5 + $0x4c] sm:$0xf]
    %v68 = vld [vmem:[#allocation5 + $0x50] sm:$0xf]
    %v69 = vld [vmem:[#allocation5 + $0x54] sm:$0xf]
    %v70 = vld [vmem:[#allocation5 + $0x58] sm:$0xf]
    %v71 = vld [vmem:[#allocation5 + $0x5c] sm:$0xf]
    %v72 = vld [vmem:[#allocation5 + $0x60] sm:$0xf]
    %v73 = vld [vmem:[#allocation5 + $0x64] sm:$0xf]
    %v74 = vld [vmem:[#allocation5 + $0x68] sm:$0xf]
    %v75 = vld [vmem:[#allocation5 + $0x6c] sm:$0xf]
    %v76 = vld [vmem:[#allocation5 + $0x70] sm:$0xf]
    %v77 = vld [vmem:[#allocation5 + $0x74] sm:$0xf]
    %v78 = vld [vmem:[#allocation5 + $0x78] sm:$0xf]
    %v79 = vld [vmem:[#allocation5 + $0x7c] sm:$0xf]
    %v80 = vld [vmem:[#allocation5 + $0x80] sm:$0xf]
    %v81 = vld [vmem:[#allocation5 + $0x84] sm:$0xf]
    %v82 = vld [vmem:[#allocation5 + $0x88] sm:$0xf]
    %v83 = vld [vmem:[#allocation5 + $0x8c] sm:$0xf]
    %v84 = vld [vmem:[#allocation5 + $0x90] sm:$0xf]
    %v85 = vld [vmem:[#allocation5 + $0x94] sm:$0xf]
    %v86 = vld [vmem:[#allocation5 + $0x98] sm:$0xf]
    %v87 = vld [vmem:[#allocation5 + $0x9c] sm:$0xf]
    %v88 = vld [vmem:[%s2] sm:$0x1]
    %v90 = vlaneseq
    %v91 = vshrl.u32 %v90, 7
    %v92 = vsub.s32 0, %v91
    %v93 = vrot.slane %v88, %v92
    %v99 = vunpack.c.l.b16 %v44
    %v100 = vunpack.c.h.b16 %v44
    %v101 = vunpack.c.l.b16 %v45
    %v102 = vunpack.c.l.b16 %v46
    %v103 = vunpack.c.h.b16 %v46
    %v104 = vunpack.c.l.b16 %v47
    %v105 = vpack.c.b16 %v102, %v99
    %v106 = vpack.c.b16 %v103, %v100
    %v107 = vpack.c.b16 %v104, %v101
    %v150 = vunpack.c.l.b16 %v48
    %v151 = vunpack.c.l.b16 %v49
    %v152 = vunpack.c.l.b16 %v50
    %v153 = vunpack.c.l.b16 %v51
    %v154 = vunpack.c.l.b16 %v52
    %v155 = vunpack.c.l.b16 %v53
    %v156 = vunpack.c.l.b16 %v54
    %v157 = vunpack.c.l.b16 %v55
    %v158 = vunpack.c.l.b16 %v56
    %v159 = vunpack.c.l.b16 %v57
    %v160 = vunpack.c.l.b16 %v58
    %v161 = vunpack.c.l.b16 %v59
    %v162 = vunpack.c.l.b16 %v60
    %v163 = vunpack.c.l.b16 %v61
    %v164 = vunpack.c.l.b16 %v62
    %v165 = vunpack.c.l.b16 %v63
    %v166 = vunpack.c.l.b16 %v64
    %v167 = vunpack.c.l.b16 %v65
    %v168 = vunpack.c.l.b16 %v66
    %v169 = vunpack.c.l.b16 %v67
    %v170 = vunpack.c.l.b16 %v68
    %v171 = vunpack.c.l.b16 %v69
    %v172 = vunpack.c.l.b16 %v70
    %v173 = vunpack.c.l.b16 %v71
    %v174 = vunpack.c.l.b16 %v72
    %v175 = vunpack.c.l.b16 %v73
    %v176 = vunpack.c.l.b16 %v74
    %v177 = vunpack.c.l.b16 %v75
    %v178 = vunpack.c.l.b16 %v76
    %v179 = vunpack.c.l.b16 %v77
    %v180 = vunpack.c.l.b16 %v78
    %v181 = vunpack.c.l.b16 %v79
    %v182 = vunpack.c.l.b16 %v80
    %v183 = vunpack.c.l.b16 %v81
    %v184 = vunpack.c.l.b16 %v82
    %v185 = vunpack.c.l.b16 %v83
    %v186 = vunpack.c.l.b16 %v84
    %v187 = vunpack.c.l.b16 %v85
    %v188 = vunpack.c.l.b16 %v86
    %v189 = vunpack.c.l.b16 %v87
    %v190 = vpack.c.b16 %v151, %v150
    %v191 = vpack.c.b16 %v153, %v152
    %v192 = vpack.c.b16 %v155, %v154
    %v193 = vpack.c.b16 %v157, %v156
    %v194 = vpack.c.b16 %v159, %v158
    %v195 = vpack.c.b16 %v161, %v160
    %v196 = vpack.c.b16 %v163, %v162
    %v197 = vpack.c.b16 %v165, %v164
    %v198 = vpack.c.b16 %v167, %v166
    %v199 = vpack.c.b16 %v169, %v168
    %v200 = vpack.c.b16 %v171, %v170
    %v201 = vpack.c.b16 %v173, %v172
    %v202 = vpack.c.b16 %v175, %v174
    %v203 = vpack.c.b16 %v177, %v176
    %v204 = vpack.c.b16 %v179, %v178
    %v205 = vpack.c.b16 %v181, %v180
    %v206 = vpack.c.b16 %v183, %v182
    %v207 = vpack.c.b16 %v185, %v184
    %v208 = vpack.c.b16 %v187, %v186
    %v209 = vpack.c.b16 %v189, %v188
    %vm230 = vcmask 523264
    %v232 = vsel %vm230, %v107, 0
    %234 = vmatprep.subr.bf16.mxu0 0
    %235 = vmatpush1.bf16.msra.mxu0 %v197
    %236 = vmatprep.subr.bf16.mxu0 0
    %237 = vmatpush1.bf16.msra.mxu0 %v196
    %238 = vmatprep.subr.bf16.mxu0 0
    %239 = vmatpush1.bf16.msra.mxu0 %v195
    %240 = vmatprep.subr.bf16.mxu0 0
    %241 = vmatpush1.bf16.msra.mxu0 %v194
    %242 = vmatprep.subr.bf16.mxu0 0
    %243 = vmatpush1.bf16.msra.mxu0 %v193
    %244 = vmatprep.subr.bf16.mxu0 0
    %245 = vmatpush1.bf16.msra.mxu0 %v192
    %246 = vmatprep.subr.bf16.mxu0 0
    %247 = vmatpush1.bf16.msra.mxu0 %v191
    %248 = vmatprep.subr.bf16.mxu0 0
    %249 = vmatpush1.bf16.msra.mxu0 %v190
    %250 = vmatprep.subr.bf16.mxu0 0
    %251 = vmatpush2.bf16.msra.mxu0 %v205
    %252 = vmatprep.subr.bf16.mxu0 0
    %253 = vmatpush2.bf16.msra.mxu0 %v204
    %254 = vmatprep.subr.bf16.mxu0 0
    %255 = vmatpush2.bf16.msra.mxu0 %v203
    %256 = vmatprep.subr.bf16.mxu0 0
    %257 = vmatpush2.bf16.msra.mxu0 %v202
    %258 = vmatprep.subr.bf16.mxu0 0
    %259 = vmatpush2.bf16.msra.mxu0 %v201
    %260 = vmatprep.subr.bf16.mxu0 0
    %261 = vmatpush2.bf16.msra.mxu0 %v200
    %262 = vmatprep.subr.bf16.mxu0 0
    %263 = vmatpush2.bf16.msra.mxu0 %v199
    %264 = vmatprep.subr.bf16.mxu0 0
    %265 = vmatpush2.bf16.msra.mxu0 %v198
    %266 = vmatprep.mubr.bf16.mxu0 %v106
    %267 = vmatmul.mubr.bf16.gmra.mxu0 %v105
    %v268 = vpop.f32.mrf.mxu0
    %v269 = vadd.f32 %v93, %v268
    %v270 = vpop.f32.mrf.mxu0
    %v271 = vpop.f32.mrf.mxu0
    %v272 = vadd.f32 %v93, %v271
    %v273 = vpop.f32.mrf.mxu0
    %274 = vdwg.mxu0
    %275 = vmatprep.subr.bf16.mxu0 0
    %276 = vmatpush1.bf16.msra.mxu0 0
    %277 = vmatprep.subr.bf16.mxu0 0
    %278 = vmatpush1.bf16.msra.mxu0 0
    %279 = vmatprep.subr.bf16.mxu0 0
    %280 = vmatpush1.bf16.msra.mxu0 0
    %281 = vmatprep.subr.bf16.mxu0 0
    %282 = vmatpush1.bf16.msra.mxu0 0
    %283 = vmatprep.subr.bf16.mxu0 0
    %284 = vmatpush1.bf16.msra.mxu0 %v209
    %285 = vmatprep.subr.bf16.mxu0 0
    %286 = vmatpush1.bf16.msra.mxu0 %v208
    %287 = vmatprep.subr.bf16.mxu0 0
    %288 = vmatpush1.bf16.msra.mxu0 %v207
    %289 = vmatprep.subr.bf16.mxu0 0
    %290 = vmatpush1.bf16.msra.mxu0 %v206
    %291 = vmatprep.subr.bf16.mxu0 0
    %292 = vmatpush2.bf16.msra.mxu0 0
    %293 = vmatprep.subr.bf16.mxu0 0
    %294 = vmatpush2.bf16.msra.mxu0 0
    %295 = vmatprep.subr.bf16.mxu0 0
    %296 = vmatpush2.bf16.msra.mxu0 0
    %297 = vmatprep.subr.bf16.mxu0 0
    %298 = vmatpush2.bf16.msra.mxu0 0
    %299 = vmatprep.subr.bf16.mxu0 0
    %300 = vmatpush2.bf16.msra.mxu0 0
    %301 = vmatprep.subr.bf16.mxu0 0
    %302 = vmatpush2.bf16.msra.mxu0 0
    %303 = vmatprep.subr.bf16.mxu0 0
    %304 = vmatpush2.bf16.msra.mxu0 0
    %305 = vmatprep.subr.bf16.mxu0 0
    %306 = vmatpush2.bf16.msra.mxu0 0
    %307 = vmatprep.mubr.bf16.mxu0 0
    %308 = vmatmul.mubr.bf16.gmra.mxu0 %v232
    %v309 = vpop.f32.mrf.mxu0
    %v310 = vadd.f32 %v269, %v309
    %v311 = vpop.f32.mrf.mxu0
    %v312 = vpop.f32.mrf.mxu0
    %v313 = vadd.f32 %v272, %v312
    %v314 = vpop.f32.mrf.mxu0
    %315 = vdwg.mxu0
    %v316 = vmax.f32 %v310, 0.0
    %v317 = vmax.f32 %v313, 0.0
    %v318 = vpack.c.bf16 %v317, %v316
    %v320 = vunpack.c.l.b16 %v318
    %v321 = vunpack.c.h.b16 %v318
    %v322 = vpack.c.b16 %v320, %v320
    %v323 = vpack.c.b16 %v321, %v321
    %326 = vst [vmem:[#allocation7] sm:$0xf] %v322
    %327 = vst [vmem:[#allocation7 + $0x4] sm:$0xf] %v323
    // Predicated region
    $region22: #{tpu_custom_call.1} parent=1 // pred_check
      _
    $region23: #{tpu_custom_call.1} parent=1 // pred_check_branch
      %329 = sbr.rel (0) target = $region25
    $region24: #{tpu_custom_call.1} parent=1 // pred_region
      %s331 = ssub.s32 128, 128
      %332 = vsyncadd [#allocation4], %s331
      %s333 = sshll.u32 [#allocation7], 4
      %s334 = int_to_ptr.vmem [resolvable:$true] %s333
      %339 = dma.vmem_to_hbm [thread:$0]  %s334, 128, %s3, [#allocation4], 64, 64, 4
    $region25: #{tpu_custom_call.1} parent=1 // pred_fallthru
      _
    // Predicated region
    $region26: #{tpu_custom_call.1} parent=1 // pred_check
      _
    $region27: #{tpu_custom_call.1} parent=1 // pred_check_branch
      %341 = sbr.rel (0) target = $region29
    $region28: #{tpu_custom_call.1} parent=1 // pred_region
      %342 = dma.done [#allocation4], 128
    $region29: #{tpu_custom_call.1} parent=1 // pred_fallthru
      _
    %343 = vsyncpa [#allocation3], 1
    %344 = vsyncpa [#allocation6], 1
    %345 = vsyncpa [#allocation4], 1

</llo_original>
